<compile_context>
chip_gen: v5e
topology: v5e:2x2
jax: 0.10.0
libtpu: 0.0.40
codegen_flags: <defaults>
</compile_context>

<pallas_src>
import functools

import jax
import jax.numpy as jnp
from jax import lax
from jax.experimental import pallas as pl
from jax.experimental.pallas import tpu as pltpu

N_BINS = 15
_LANE = 128


def _acce_kernel(logits_ref, labels_ref, out_ref, *, n_bins, n_valid):
    p = pl.program_id(0)            # parallel part (megacore split on v7x)
    t = pl.program_id(1)            # tile along the sample (lane) axis
    n_tiles = pl.num_programs(1)

    # Zero this part's resident accumulator block on its first tile.
    @pl.when(t == 0)
    def _init():
        out_ref[...] = jnp.zeros_like(out_ref)

    logits = logits_ref[...].astype(jnp.float32)          # (C, TILE_N)
    labels = labels_ref[...]                              # (1, TILE_N) int32
    c, tile_n = logits.shape

    # Softmax over classes (the sublane axis).
    m = jnp.max(logits, axis=0, keepdims=True)            # (1, TILE_N)
    e = jnp.exp(logits - m)
    denom = jnp.sum(e, axis=0, keepdims=True)             # (1, TILE_N)
    conf = e * pl.reciprocal(denom, approx=False)         # (C, TILE_N)

    # accuracies[k, i] = (k == labels[i])
    cls = lax.broadcasted_iota(jnp.int32, (c, tile_n), 0)
    acc = (cls == labels).astype(jnp.float32)             # (C, TILE_N)
    diff = conf - acc

    # Mask padded sample columns (global column >= n_valid).
    col = lax.broadcasted_iota(jnp.int32, (1, tile_n), 1)
    col = col + (p * n_tiles + t) * tile_n
    valid = col < n_valid                                  # (1, TILE_N)

    # Bin index: conf in (b/n_bins, (b+1)/n_bins]  <=>  ceil(conf*n_bins)-1 == b.
    braw = jnp.ceil(conf * jnp.float32(n_bins)).astype(jnp.int32) - 1
    braw = jnp.clip(braw, 0, n_bins - 1)
    bin_idx = jnp.where(jnp.logical_and(valid, conf > 0.0), braw, -1)

    # Lane-resident accumulation of the signed per-(bin, class) sum of diff.
    for b in range(n_bins):
        out_ref[0, b] += jnp.where(bin_idx == b, diff, jnp.float32(0.0))


def acce_loss(logits, labels, n_bins=N_BINS, *, max_tile_n=2048):
    """Pallas implementation of ACCELoss.forward(logits, labels). Returns (1,) f32."""
    n, c = logits.shape

    # Lane-dense layout: classes -> sublanes, samples -> lanes.
    # TODO(synk): for very large C (>= 128) the untransposed (N, C) layout would
    # be preferable; this path targets the common small-C classification case.
    logits_t = jnp.transpose(logits)                       # (C, N), native dtype
    labels_r = labels.astype(jnp.int32).reshape(1, n)      # (1, N) lane-dense

    # Tile size along the sample/lane axis: as large as a ~4 MiB resident
    # accumulator block (n_bins * C * TILE_N * 4B) allows, capped at max_tile_n.
    acc_budget = 4 * 1024 * 1024
    t_cap = max(_LANE, (acc_budget // (n_bins * c * 4) // _LANE) * _LANE)
    n_lane = -(-n // _LANE) * _LANE
    tile_n = min(max_tile_n, t_cap, n_lane)

    tiles_total = -(-n // tile_n)
    num_par = 2 if tiles_total >= 2 else 1   # v7x: 2 TensorCores; loops on v5e/v6e
    tiles_per_part = -(-tiles_total // num_par)
    n_pad = num_par * tiles_per_part * tile_n

    if n_pad != n:
        logits_t = jnp.pad(logits_t, ((0, 0), (0, n_pad - n)))
        labels_r = jnp.pad(labels_r, ((0, 0), (0, n_pad - n)), constant_values=-1)

    tpp = tiles_per_part
    kernel = functools.partial(_acce_kernel, n_bins=n_bins, n_valid=n)

    raw = pl.pallas_call(
        kernel,
        out_shape=jax.ShapeDtypeStruct((num_par, n_bins, c, tile_n), jnp.float32),
        grid_spec=pltpu.PrefetchScalarGridSpec(
            num_scalar_prefetch=0,
            grid=(num_par, tiles_per_part),
            in_specs=[
                pl.BlockSpec((c, tile_n), lambda p, t: (0, p * tpp + t)),
                pl.BlockSpec((1, tile_n), lambda p, t: (0, p * tpp + t)),
            ],
            out_specs=pl.BlockSpec((1, n_bins, c, tile_n),
                                   lambda p, t: (p, 0, 0, 0)),
        ),
        compiler_params=pltpu.CompilerParams(
            dimension_semantics=("parallel", "arbitrary"),
            vmem_limit_bytes=32 * 1024 * 1024,
        ),
    )(logits_t, labels_r)

    # Combine across parallel parts and lanes BEFORE taking abs (non-linear).
    per_bin_class = jnp.sum(raw, axis=(0, 3))              # (n_bins, C)
    ece = jnp.sum(jnp.abs(per_bin_class)) / jnp.float32(n * c)
    return ece.reshape(1)                                  # matches torch.zeros(1)


def acce_loss_reference(logits, labels, n_bins=N_BINS):
    """Pure-JAX reference with the literal per-bin torch semantics."""
    n, c = logits.shape
    conf = jax.nn.softmax(logits.astype(jnp.float32), axis=1)
    acc = (jnp.arange(c)[None, :] == labels[:, None]).astype(jnp.float32)
    total = jnp.zeros((), jnp.float32)
    for b in range(n_bins):
        lo = b / n_bins
        hi = (b + 1) / n_bins
        in_bin = jnp.logical_and(conf > lo, conf <= hi).astype(jnp.float32)
        count = jnp.sum(in_bin, axis=0)
        safe = jnp.maximum(count, 1.0)
        gap = jnp.abs(jnp.sum(conf * in_bin, axis=0) / safe
                      - jnp.sum(acc * in_bin, axis=0) / safe)
        prob = count / jnp.float32(n)
        total = total + jnp.sum(jnp.where(count > 0.0, gap * prob / c, 0.0))
    return total.reshape(1)


if __name__ == "__main__":
    key = jax.random.PRNGKey(0)

    # (N, C, max_tile_n): second case forces multi-tile + 2-part parallel path.
    cases = [(64, 8, 2048), (300, 10, 128)]
    for (N, C, mt) in cases:
        k1, k2, key = jax.random.split(key, 3)
        logits = jax.random.normal(k1, (N, C), dtype=jnp.float32) * 2.0
        labels = jax.random.randint(k2, (N,), 0, C, dtype=jnp.int32)

        ece = jax.block_until_ready(acce_loss(logits, labels, max_tile_n=mt))
        ece_ref = jax.block_until_ready(acce_loss_reference(logits, labels))

        assert ece.shape == (1,)
        assert jnp.allclose(ece, ece_ref, atol=1e-5, rtol=1e-4), (N, C, ece, ece_ref)

    print("KERNEL_OK")
</pallas_src>

<mosaic_0001>
module attributes {stable_mosaic.version = 11 : i64} {
  func.func @_acce_kernel(%arg0: i32, %arg1: i32, %arg2: memref<8x128xf32, #tpu.memory_space<vmem>>, %arg3: memref<1x128xi32, #tpu.memory_space<vmem>>, %arg4: memref<1x15x8x128xf32, #tpu.memory_space<vmem>>) attributes {dimension_semantics = [#tpu.dimension_semantics<parallel>, #tpu.dimension_semantics<arbitrary>], iteration_bounds = array<i64: 1, 1>, scalar_prefetch = 0 : i64, scratch_operands = 0 : i64, tpu.core_type = #tpu.core_type<tc>, window_params = [{transform_indices = @transform_0, window_bounds = array<i64: 8, 128>}, {transform_indices = @transform_1, window_bounds = array<i64: 1, 128>}, {transform_indices = @transform_2, window_bounds = array<i64: 1, 15, 8, 128>}]} {
    %c0_i32 = arith.constant 0 : i32
    %0 = arith.cmpi eq, %arg1, %c0_i32 : i32
    %1 = arith.extui %0 : i1 to i32
    %c0_i32_0 = arith.constant 0 : i32
    %2 = arith.cmpi ne, %1, %c0_i32_0 : i32
    scf.if %2 {
      %cst_133 = arith.constant 0.000000e+00 : f32
      %195 = vector.broadcast %cst_133 : f32 to vector<1x15x8x128xf32>
      %c0_134 = arith.constant 0 : index
      %c0_135 = arith.constant 0 : index
      %c0_136 = arith.constant 0 : index
      %c0_137 = arith.constant 0 : index
      %196 = vector.load %arg4[%c0_134, %c0_135, %c0_136, %c0_137] : memref<1x15x8x128xf32, #tpu.memory_space<vmem>>, vector<1x15x8x128xf32>
      tpu.vector_store %arg4[%c0_134, %c0_135, %c0_136, %c0_137], %195 {strides = array<i32>} : memref<1x15x8x128xf32, #tpu.memory_space<vmem>>, vector<1x15x8x128xf32>,
    } else {
    }
    %c0 = arith.constant 0 : index
    %c0_1 = arith.constant 0 : index
    %3 = vector.load %arg2[%c0, %c0_1] : memref<8x128xf32, #tpu.memory_space<vmem>>, vector<8x128xf32>
    %c0_2 = arith.constant 0 : index
    %c0_3 = arith.constant 0 : index
    %4 = vector.load %arg3[%c0_2, %c0_3] : memref<1x128xi32, #tpu.memory_space<vmem>>, vector<1x128xi32>
    %cst = arith.constant dense<0xFF800000> : vector<128xf32>
    %5 = vector.multi_reduction <maximumf>, %3, %cst [0] : vector<8x128xf32> to vector<128xf32>
    %6 = vector.shape_cast %5 : vector<128xf32> to vector<1x128xf32>
    %7 = vector.broadcast %6 : vector<1x128xf32> to vector<8x128xf32>
    %8 = arith.subf %3, %7 : vector<8x128xf32>
    %9 = math.exp %8 : vector<8x128xf32>
    %cst_4 = arith.constant dense<0.000000e+00> : vector<128xf32>
    %10 = vector.multi_reduction <add>, %9, %cst_4 [0] : vector<8x128xf32> to vector<128xf32>
    %11 = vector.shape_cast %10 : vector<128xf32> to vector<1x128xf32>
    %12 = tpu.reciprocal %11 : vector<1x128xf32> -> vector<1x128xf32>
    %13 = vector.broadcast %12 : vector<1x128xf32> to vector<8x128xf32>
    %14 = arith.mulf %9, %13 : vector<8x128xf32>
    %15 = tpu.iota {dimensions = array<i32: 0>} : vector<8x128xi32>
    %16 = vector.broadcast %4 : vector<1x128xi32> to vector<8x128xi32>
    %17 = arith.cmpi eq, %15, %16 : vector<8x128xi32>
    %18 = arith.extui %17 : vector<8x128xi1> to vector<8x128xi32>
    %19 = arith.sitofp %18 : vector<8x128xi32> to vector<8x128xf32>
    %20 = arith.subf %14, %19 : vector<8x128xf32>
    %21 = tpu.iota {dimensions = array<i32: 1>} : vector<1x128xi32>
    %c1_i32 = arith.constant 1 : i32
    %22 = arith.muli %arg0, %c1_i32 : i32
    %23 = arith.addi %22, %arg1 : i32
    %c128_i32 = arith.constant 128 : i32
    %24 = arith.muli %23, %c128_i32 : i32
    %25 = vector.broadcast %24 : i32 to vector<1x128xi32>
    %26 = arith.addi %21, %25 : vector<1x128xi32>
    %c64_i32 = arith.constant 64 : i32
    %27 = vector.broadcast %c64_i32 : i32 to vector<1x128xi32>
    %28 = arith.cmpi slt, %26, %27 : vector<1x128xi32>
    %cst_5 = arith.constant 1.500000e+01 : f32
    %29 = vector.broadcast %cst_5 : f32 to vector<8x128xf32>
    %30 = arith.mulf %14, %29 : vector<8x128xf32>
    %31 = math.ceil %30 : vector<8x128xf32>
    %32 = arith.fptosi %31 : vector<8x128xf32> to vector<8x128xi32>
    %c1_i32_6 = arith.constant 1 : i32
    %33 = vector.broadcast %c1_i32_6 : i32 to vector<8x128xi32>
    %34 = arith.subi %32, %33 : vector<8x128xi32>
    %c0_i32_7 = arith.constant 0 : i32
    %c14_i32 = arith.constant 14 : i32
    %35 = vector.broadcast %c0_i32_7 : i32 to vector<8x128xi32>
    %36 = arith.maxsi %35, %34 : vector<8x128xi32>
    %37 = vector.broadcast %c14_i32 : i32 to vector<8x128xi32>
    %38 = arith.minsi %37, %36 : vector<8x128xi32>
    %cst_8 = arith.constant 0.000000e+00 : f32
    %39 = vector.broadcast %cst_8 : f32 to vector<8x128xf32>
    %40 = arith.cmpf ogt, %14, %39 : vector<8x128xf32>
    %41 = vector.broadcast %28 : vector<1x128xi1> to vector<8x128xi1>
    %42 = arith.andi %41, %40 : vector<8x128xi1>
    %c-1_i32 = arith.constant -1 : i32
    %43 = vector.broadcast %c-1_i32 : i32 to vector<8x128xi32>
    %44 = arith.select %42, %38, %43 : vector<8x128xi1>, vector<8x128xi32>
    %c0_9 = arith.constant 0 : index
    %c0_10 = arith.constant 0 : index
    %c0_11 = arith.constant 0 : index
    %c0_12 = arith.constant 0 : index
    %45 = vector.load %arg4[%c0_9, %c0_10, %c0_11, %c0_12] : memref<1x15x8x128xf32, #tpu.memory_space<vmem>>, vector<1x1x8x128xf32>
    %46 = vector.shape_cast %45 : vector<1x1x8x128xf32> to vector<8x128xf32>
    %c0_i32_13 = arith.constant 0 : i32
    %47 = vector.broadcast %c0_i32_13 : i32 to vector<8x128xi32>
    %48 = arith.cmpi eq, %44, %47 : vector<8x128xi32>
    %cst_14 = arith.constant 0.000000e+00 : f32
    %49 = vector.broadcast %cst_14 : f32 to vector<8x128xf32>
    %50 = arith.select %48, %20, %49 : vector<8x128xi1>, vector<8x128xf32>
    %51 = arith.addf %46, %50 : vector<8x128xf32>
    %c0_15 = arith.constant 0 : index
    %c0_16 = arith.constant 0 : index
    %c0_17 = arith.constant 0 : index
    %c0_18 = arith.constant 0 : index
    %52 = vector.load %arg4[%c0_15, %c0_16, %c0_17, %c0_18] : memref<1x15x8x128xf32, #tpu.memory_space<vmem>>, vector<1x1x8x128xf32>
    %53 = vector.shape_cast %52 : vector<1x1x8x128xf32> to vector<8x128xf32>
    %54 = vector.shape_cast %51 : vector<8x128xf32> to vector<1x1x8x128xf32>
    tpu.vector_store %arg4[%c0_15, %c0_16, %c0_17, %c0_18], %54 {strides = array<i32>} : memref<1x15x8x128xf32, #tpu.memory_space<vmem>>, vector<1x1x8x128xf32>,
    %c0_19 = arith.constant 0 : index
    %c1 = arith.constant 1 : index
    %c0_20 = arith.constant 0 : index
    %c0_21 = arith.constant 0 : index
    %55 = vector.load %arg4[%c0_19, %c1, %c0_20, %c0_21] : memref<1x15x8x128xf32, #tpu.memory_space<vmem>>, vector<1x1x8x128xf32>
    %56 = vector.shape_cast %55 : vector<1x1x8x128xf32> to vector<8x128xf32>
    %c1_i32_22 = arith.constant 1 : i32
    %57 = vector.broadcast %c1_i32_22 : i32 to vector<8x128xi32>
    %58 = arith.cmpi eq, %44, %57 : vector<8x128xi32>
    %cst_23 = arith.constant 0.000000e+00 : f32
    %59 = vector.broadcast %cst_23 : f32 to vector<8x128xf32>
    %60 = arith.select %58, %20, %59 : vector<8x128xi1>, vector<8x128xf32>
    %61 = arith.addf %56, %60 : vector<8x128xf32>
    %c0_24 = arith.constant 0 : index
    %c1_25 = arith.constant 1 : index
    %c0_26 = arith.constant 0 : index
    %c0_27 = arith.constant 0 : index
    %62 = vector.load %arg4[%c0_24, %c1_25, %c0_26, %c0_27] : memref<1x15x8x128xf32, #tpu.memory_space<vmem>>, vector<1x1x8x128xf32>
    %63 = vector.shape_cast %62 : vector<1x1x8x128xf32> to vector<8x128xf32>
    %64 = vector.shape_cast %61 : vector<8x128xf32> to vector<1x1x8x128xf32>
    tpu.vector_store %arg4[%c0_24, %c1_25, %c0_26, %c0_27], %64 {strides = array<i32>} : memref<1x15x8x128xf32, #tpu.memory_space<vmem>>, vector<1x1x8x128xf32>,
    %c0_28 = arith.constant 0 : index
    %c2 = arith.constant 2 : index
    %c0_29 = arith.constant 0 : index
    %c0_30 = arith.constant 0 : index
    %65 = vector.load %arg4[%c0_28, %c2, %c0_29, %c0_30] : memref<1x15x8x128xf32, #tpu.memory_space<vmem>>, vector<1x1x8x128xf32>
    %66 = vector.shape_cast %65 : vector<1x1x8x128xf32> to vector<8x128xf32>
    %c2_i32 = arith.constant 2 : i32
    %67 = vector.broadcast %c2_i32 : i32 to vector<8x128xi32>
    %68 = arith.cmpi eq, %44, %67 : vector<8x128xi32>
    %cst_31 = arith.constant 0.000000e+00 : f32
    %69 = vector.broadcast %cst_31 : f32 to vector<8x128xf32>
    %70 = arith.select %68, %20, %69 : vector<8x128xi1>, vector<8x128xf32>
    %71 = arith.addf %66, %70 : vector<8x128xf32>
    %c0_32 = arith.constant 0 : index
    %c2_33 = arith.constant 2 : index
    %c0_34 = arith.constant 0 : index
    %c0_35 = arith.constant 0 : index
    %72 = vector.load %arg4[%c0_32, %c2_33, %c0_34, %c0_35] : memref<1x15x8x128xf32, #tpu.memory_space<vmem>>, vector<1x1x8x128xf32>
    %73 = vector.shape_cast %72 : vector<1x1x8x128xf32> to vector<8x128xf32>
    %74 = vector.shape_cast %71 : vector<8x128xf32> to vector<1x1x8x128xf32>
    tpu.vector_store %arg4[%c0_32, %c2_33, %c0_34, %c0_35], %74 {strides = array<i32>} : memref<1x15x8x128xf32, #tpu.memory_space<vmem>>, vector<1x1x8x128xf32>,
    %c0_36 = arith.constant 0 : index
    %c3 = arith.constant 3 : index
    %c0_37 = arith.constant 0 : index
    %c0_38 = arith.constant 0 : index
    %75 = vector.load %arg4[%c0_36, %c3, %c0_37, %c0_38] : memref<1x15x8x128xf32, #tpu.memory_space<vmem>>, vector<1x1x8x128xf32>
    %76 = vector.shape_cast %75 : vector<1x1x8x128xf32> to vector<8x128xf32>
    %c3_i32 = arith.constant 3 : i32
    %77 = vector.broadcast %c3_i32 : i32 to vector<8x128xi32>
    %78 = arith.cmpi eq, %44, %77 : vector<8x128xi32>
    %cst_39 = arith.constant 0.000000e+00 : f32
    %79 = vector.broadcast %cst_39 : f32 to vector<8x128xf32>
    %80 = arith.select %78, %20, %79 : vector<8x128xi1>, vector<8x128xf32>
    %81 = arith.addf %76, %80 : vector<8x128xf32>
    %c0_40 = arith.constant 0 : index
    %c3_41 = arith.constant 3 : index
    %c0_42 = arith.constant 0 : index
    %c0_43 = arith.constant 0 : index
    %82 = vector.load %arg4[%c0_40, %c3_41, %c0_42, %c0_43] : memref<1x15x8x128xf32, #tpu.memory_space<vmem>>, vector<1x1x8x128xf32>
    %83 = vector.shape_cast %82 : vector<1x1x8x128xf32> to vector<8x128xf32>
    %84 = vector.shape_cast %81 : vector<8x128xf32> to vector<1x1x8x128xf32>
    tpu.vector_store %arg4[%c0_40, %c3_41, %c0_42, %c0_43], %84 {strides = array<i32>} : memref<1x15x8x128xf32, #tpu.memory_space<vmem>>, vector<1x1x8x128xf32>,
    %c0_44 = arith.constant 0 : index
    %c4 = arith.constant 4 : index
    %c0_45 = arith.constant 0 : index
    %c0_46 = arith.constant 0 : index
    %85 = vector.load %arg4[%c0_44, %c4, %c0_45, %c0_46] : memref<1x15x8x128xf32, #tpu.memory_space<vmem>>, vector<1x1x8x128xf32>
    %86 = vector.shape_cast %85 : vector<1x1x8x128xf32> to vector<8x128xf32>
    %c4_i32 = arith.constant 4 : i32
    %87 = vector.broadcast %c4_i32 : i32 to vector<8x128xi32>
    %88 = arith.cmpi eq, %44, %87 : vector<8x128xi32>
    %cst_47 = arith.constant 0.000000e+00 : f32
    %89 = vector.broadcast %cst_47 : f32 to vector<8x128xf32>
    %90 = arith.select %88, %20, %89 : vector<8x128xi1>, vector<8x128xf32>
    %91 = arith.addf %86, %90 : vector<8x128xf32>
    %c0_48 = arith.constant 0 : index
    %c4_49 = arith.constant 4 : index
    %c0_50 = arith.constant 0 : index
    %c0_51 = arith.constant 0 : index
    %92 = vector.load %arg4[%c0_48, %c4_49, %c0_50, %c0_51] : memref<1x15x8x128xf32, #tpu.memory_space<vmem>>, vector<1x1x8x128xf32>
    %93 = vector.shape_cast %92 : vector<1x1x8x128xf32> to vector<8x128xf32>
    %94 = vector.shape_cast %91 : vector<8x128xf32> to vector<1x1x8x128xf32>
    tpu.vector_store %arg4[%c0_48, %c4_49, %c0_50, %c0_51], %94 {strides = array<i32>} : memref<1x15x8x128xf32, #tpu.memory_space<vmem>>, vector<1x1x8x128xf32>,
    %c0_52 = arith.constant 0 : index
    %c5 = arith.constant 5 : index
    %c0_53 = arith.constant 0 : index
    %c0_54 = arith.constant 0 : index
    %95 = vector.load %arg4[%c0_52, %c5, %c0_53, %c0_54] : memref<1x15x8x128xf32, #tpu.memory_space<vmem>>, vector<1x1x8x128xf32>
    %96 = vector.shape_cast %95 : vector<1x1x8x128xf32> to vector<8x128xf32>
    %c5_i32 = arith.constant 5 : i32
    %97 = vector.broadcast %c5_i32 : i32 to vector<8x128xi32>
    %98 = arith.cmpi eq, %44, %97 : vector<8x128xi32>
    %cst_55 = arith.constant 0.000000e+00 : f32
    %99 = vector.broadcast %cst_55 : f32 to vector<8x128xf32>
    %100 = arith.select %98, %20, %99 : vector<8x128xi1>, vector<8x128xf32>
    %101 = arith.addf %96, %100 : vector<8x128xf32>
    %c0_56 = arith.constant 0 : index
    %c5_57 = arith.constant 5 : index
    %c0_58 = arith.constant 0 : index
    %c0_59 = arith.constant 0 : index
    %102 = vector.load %arg4[%c0_56, %c5_57, %c0_58, %c0_59] : memref<1x15x8x128xf32, #tpu.memory_space<vmem>>, vector<1x1x8x128xf32>
    %103 = vector.shape_cast %102 : vector<1x1x8x128xf32> to vector<8x128xf32>
    %104 = vector.shape_cast %101 : vector<8x128xf32> to vector<1x1x8x128xf32>
    tpu.vector_store %arg4[%c0_56, %c5_57, %c0_58, %c0_59], %104 {strides = array<i32>} : memref<1x15x8x128xf32, #tpu.memory_space<vmem>>, vector<1x1x8x128xf32>,
    %c0_60 = arith.constant 0 : index
    %c6 = arith.constant 6 : index
    %c0_61 = arith.constant 0 : index
    %c0_62 = arith.constant 0 : index
    %105 = vector.load %arg4[%c0_60, %c6, %c0_61, %c0_62] : memref<1x15x8x128xf32, #tpu.memory_space<vmem>>, vector<1x1x8x128xf32>
    %106 = vector.shape_cast %105 : vector<1x1x8x128xf32> to vector<8x128xf32>
    %c6_i32 = arith.constant 6 : i32
    %107 = vector.broadcast %c6_i32 : i32 to vector<8x128xi32>
    %108 = arith.cmpi eq, %44, %107 : vector<8x128xi32>
    %cst_63 = arith.constant 0.000000e+00 : f32
    %109 = vector.broadcast %cst_63 : f32 to vector<8x128xf32>
    %110 = arith.select %108, %20, %109 : vector<8x128xi1>, vector<8x128xf32>
    %111 = arith.addf %106, %110 : vector<8x128xf32>
    %c0_64 = arith.constant 0 : index
    %c6_65 = arith.constant 6 : index
    %c0_66 = arith.constant 0 : index
    %c0_67 = arith.constant 0 : index
    %112 = vector.load %arg4[%c0_64, %c6_65, %c0_66, %c0_67] : memref<1x15x8x128xf32, #tpu.memory_space<vmem>>, vector<1x1x8x128xf32>
    %113 = vector.shape_cast %112 : vector<1x1x8x128xf32> to vector<8x128xf32>
    %114 = vector.shape_cast %111 : vector<8x128xf32> to vector<1x1x8x128xf32>
    tpu.vector_store %arg4[%c0_64, %c6_65, %c0_66, %c0_67], %114 {strides = array<i32>} : memref<1x15x8x128xf32, #tpu.memory_space<vmem>>, vector<1x1x8x128xf32>,
    %c0_68 = arith.constant 0 : index
    %c7 = arith.constant 7 : index
    %c0_69 = arith.constant 0 : index
    %c0_70 = arith.constant 0 : index
    %115 = vector.load %arg4[%c0_68, %c7, %c0_69, %c0_70] : memref<1x15x8x128xf32, #tpu.memory_space<vmem>>, vector<1x1x8x128xf32>
    %116 = vector.shape_cast %115 : vector<1x1x8x128xf32> to vector<8x128xf32>
    %c7_i32 = arith.constant 7 : i32
    %117 = vector.broadcast %c7_i32 : i32 to vector<8x128xi32>
    %118 = arith.cmpi eq, %44, %117 : vector<8x128xi32>
    %cst_71 = arith.constant 0.000000e+00 : f32
    %119 = vector.broadcast %cst_71 : f32 to vector<8x128xf32>
    %120 = arith.select %118, %20, %119 : vector<8x128xi1>, vector<8x128xf32>
    %121 = arith.addf %116, %120 : vector<8x128xf32>
    %c0_72 = arith.constant 0 : index
    %c7_73 = arith.constant 7 : index
    %c0_74 = arith.constant 0 : index
    %c0_75 = arith.constant 0 : index
    %122 = vector.load %arg4[%c0_72, %c7_73, %c0_74, %c0_75] : memref<1x15x8x128xf32, #tpu.memory_space<vmem>>, vector<1x1x8x128xf32>
    %123 = vector.shape_cast %122 : vector<1x1x8x128xf32> to vector<8x128xf32>
    %124 = vector.shape_cast %121 : vector<8x128xf32> to vector<1x1x8x128xf32>
    tpu.vector_store %arg4[%c0_72, %c7_73, %c0_74, %c0_75], %124 {strides = array<i32>} : memref<1x15x8x128xf32, #tpu.memory_space<vmem>>, vector<1x1x8x128xf32>,
    %c0_76 = arith.constant 0 : index
    %c8 = arith.constant 8 : index
    %c0_77 = arith.constant 0 : index
    %c0_78 = arith.constant 0 : index
    %125 = vector.load %arg4[%c0_76, %c8, %c0_77, %c0_78] : memref<1x15x8x128xf32, #tpu.memory_space<vmem>>, vector<1x1x8x128xf32>
    %126 = vector.shape_cast %125 : vector<1x1x8x128xf32> to vector<8x128xf32>
    %c8_i32 = arith.constant 8 : i32
    %127 = vector.broadcast %c8_i32 : i32 to vector<8x128xi32>
    %128 = arith.cmpi eq, %44, %127 : vector<8x128xi32>
    %cst_79 = arith.constant 0.000000e+00 : f32
    %129 = vector.broadcast %cst_79 : f32 to vector<8x128xf32>
    %130 = arith.select %128, %20, %129 : vector<8x128xi1>, vector<8x128xf32>
    %131 = arith.addf %126, %130 : vector<8x128xf32>
    %c0_80 = arith.constant 0 : index
    %c8_81 = arith.constant 8 : index
    %c0_82 = arith.constant 0 : index
    %c0_83 = arith.constant 0 : index
    %132 = vector.load %arg4[%c0_80, %c8_81, %c0_82, %c0_83] : memref<1x15x8x128xf32, #tpu.memory_space<vmem>>, vector<1x1x8x128xf32>
    %133 = vector.shape_cast %132 : vector<1x1x8x128xf32> to vector<8x128xf32>
    %134 = vector.shape_cast %131 : vector<8x128xf32> to vector<1x1x8x128xf32>
    tpu.vector_store %arg4[%c0_80, %c8_81, %c0_82, %c0_83], %134 {strides = array<i32>} : memref<1x15x8x128xf32, #tpu.memory_space<vmem>>, vector<1x1x8x128xf32>,
    %c0_84 = arith.constant 0 : index
    %c9 = arith.constant 9 : index
    %c0_85 = arith.constant 0 : index
    %c0_86 = arith.constant 0 : index
    %135 = vector.load %arg4[%c0_84, %c9, %c0_85, %c0_86] : memref<1x15x8x128xf32, #tpu.memory_space<vmem>>, vector<1x1x8x128xf32>
    %136 = vector.shape_cast %135 : vector<1x1x8x128xf32> to vector<8x128xf32>
    %c9_i32 = arith.constant 9 : i32
    %137 = vector.broadcast %c9_i32 : i32 to vector<8x128xi32>
    %138 = arith.cmpi eq, %44, %137 : vector<8x128xi32>
    %cst_87 = arith.constant 0.000000e+00 : f32
    %139 = vector.broadcast %cst_87 : f32 to vector<8x128xf32>
    %140 = arith.select %138, %20, %139 : vector<8x128xi1>, vector<8x128xf32>
    %141 = arith.addf %136, %140 : vector<8x128xf32>
    %c0_88 = arith.constant 0 : index
    %c9_89 = arith.constant 9 : index
    %c0_90 = arith.constant 0 : index
    %c0_91 = arith.constant 0 : index
    %142 = vector.load %arg4[%c0_88, %c9_89, %c0_90, %c0_91] : memref<1x15x8x128xf32, #tpu.memory_space<vmem>>, vector<1x1x8x128xf32>
    %143 = vector.shape_cast %142 : vector<1x1x8x128xf32> to vector<8x128xf32>
    %144 = vector.shape_cast %141 : vector<8x128xf32> to vector<1x1x8x128xf32>
    tpu.vector_store %arg4[%c0_88, %c9_89, %c0_90, %c0_91], %144 {strides = array<i32>} : memref<1x15x8x128xf32, #tpu.memory_space<vmem>>, vector<1x1x8x128xf32>,
    %c0_92 = arith.constant 0 : index
    %c10 = arith.constant 10 : index
    %c0_93 = arith.constant 0 : index
    %c0_94 = arith.constant 0 : index
    %145 = vector.load %arg4[%c0_92, %c10, %c0_93, %c0_94] : memref<1x15x8x128xf32, #tpu.memory_space<vmem>>, vector<1x1x8x128xf32>
    %146 = vector.shape_cast %145 : vector<1x1x8x128xf32> to vector<8x128xf32>
    %c10_i32 = arith.constant 10 : i32
    %147 = vector.broadcast %c10_i32 : i32 to vector<8x128xi32>
    %148 = arith.cmpi eq, %44, %147 : vector<8x128xi32>
    %cst_95 = arith.constant 0.000000e+00 : f32
    %149 = vector.broadcast %cst_95 : f32 to vector<8x128xf32>
    %150 = arith.select %148, %20, %149 : vector<8x128xi1>, vector<8x128xf32>
    %151 = arith.addf %146, %150 : vector<8x128xf32>
    %c0_96 = arith.constant 0 : index
    %c10_97 = arith.constant 10 : index
    %c0_98 = arith.constant 0 : index
    %c0_99 = arith.constant 0 : index
    %152 = vector.load %arg4[%c0_96, %c10_97, %c0_98, %c0_99] : memref<1x15x8x128xf32, #tpu.memory_space<vmem>>, vector<1x1x8x128xf32>
    %153 = vector.shape_cast %152 : vector<1x1x8x128xf32> to vector<8x128xf32>
    %154 = vector.shape_cast %151 : vector<8x128xf32> to vector<1x1x8x128xf32>
    tpu.vector_store %arg4[%c0_96, %c10_97, %c0_98, %c0_99], %154 {strides = array<i32>} : memref<1x15x8x128xf32, #tpu.memory_space<vmem>>, vector<1x1x8x128xf32>,
    %c0_100 = arith.constant 0 : index
    %c11 = arith.constant 11 : index
    %c0_101 = arith.constant 0 : index
    %c0_102 = arith.constant 0 : index
    %155 = vector.load %arg4[%c0_100, %c11, %c0_101, %c0_102] : memref<1x15x8x128xf32, #tpu.memory_space<vmem>>, vector<1x1x8x128xf32>
    %156 = vector.shape_cast %155 : vector<1x1x8x128xf32> to vector<8x128xf32>
    %c11_i32 = arith.constant 11 : i32
    %157 = vector.broadcast %c11_i32 : i32 to vector<8x128xi32>
    %158 = arith.cmpi eq, %44, %157 : vector<8x128xi32>
    %cst_103 = arith.constant 0.000000e+00 : f32
    %159 = vector.broadcast %cst_103 : f32 to vector<8x128xf32>
    %160 = arith.select %158, %20, %159 : vector<8x128xi1>, vector<8x128xf32>
    %161 = arith.addf %156, %160 : vector<8x128xf32>
    %c0_104 = arith.constant 0 : index
    %c11_105 = arith.constant 11 : index
    %c0_106 = arith.constant 0 : index
    %c0_107 = arith.constant 0 : index
    %162 = vector.load %arg4[%c0_104, %c11_105, %c0_106, %c0_107] : memref<1x15x8x128xf32, #tpu.memory_space<vmem>>, vector<1x1x8x128xf32>
    %163 = vector.shape_cast %162 : vector<1x1x8x128xf32> to vector<8x128xf32>
    %164 = vector.shape_cast %161 : vector<8x128xf32> to vector<1x1x8x128xf32>
    tpu.vector_store %arg4[%c0_104, %c11_105, %c0_106, %c0_107], %164 {strides = array<i32>} : memref<1x15x8x128xf32, #tpu.memory_space<vmem>>, vector<1x1x8x128xf32>,
    %c0_108 = arith.constant 0 : index
    %c12 = arith.constant 12 : index
    %c0_109 = arith.constant 0 : index
    %c0_110 = arith.constant 0 : index
    %165 = vector.load %arg4[%c0_108, %c12, %c0_109, %c0_110] : memref<1x15x8x128xf32, #tpu.memory_space<vmem>>, vector<1x1x8x128xf32>
    %166 = vector.shape_cast %165 : vector<1x1x8x128xf32> to vector<8x128xf32>
    %c12_i32 = arith.constant 12 : i32
    %167 = vector.broadcast %c12_i32 : i32 to vector<8x128xi32>
    %168 = arith.cmpi eq, %44, %167 : vector<8x128xi32>
    %cst_111 = arith.constant 0.000000e+00 : f32
    %169 = vector.broadcast %cst_111 : f32 to vector<8x128xf32>
    %170 = arith.select %168, %20, %169 : vector<8x128xi1>, vector<8x128xf32>
    %171 = arith.addf %166, %170 : vector<8x128xf32>
    %c0_112 = arith.constant 0 : index
    %c12_113 = arith.constant 12 : index
    %c0_114 = arith.constant 0 : index
    %c0_115 = arith.constant 0 : index
    %172 = vector.load %arg4[%c0_112, %c12_113, %c0_114, %c0_115] : memref<1x15x8x128xf32, #tpu.memory_space<vmem>>, vector<1x1x8x128xf32>
    %173 = vector.shape_cast %172 : vector<1x1x8x128xf32> to vector<8x128xf32>
    %174 = vector.shape_cast %171 : vector<8x128xf32> to vector<1x1x8x128xf32>
    tpu.vector_store %arg4[%c0_112, %c12_113, %c0_114, %c0_115], %174 {strides = array<i32>} : memref<1x15x8x128xf32, #tpu.memory_space<vmem>>, vector<1x1x8x128xf32>,
    %c0_116 = arith.constant 0 : index
    %c13 = arith.constant 13 : index
    %c0_117 = arith.constant 0 : index
    %c0_118 = arith.constant 0 : index
    %175 = vector.load %arg4[%c0_116, %c13, %c0_117, %c0_118] : memref<1x15x8x128xf32, #tpu.memory_space<vmem>>, vector<1x1x8x128xf32>
    %176 = vector.shape_cast %175 : vector<1x1x8x128xf32> to vector<8x128xf32>
    %c13_i32 = arith.constant 13 : i32
    %177 = vector.broadcast %c13_i32 : i32 to vector<8x128xi32>
    %178 = arith.cmpi eq, %44, %177 : vector<8x128xi32>
    %cst_119 = arith.constant 0.000000e+00 : f32
    %179 = vector.broadcast %cst_119 : f32 to vector<8x128xf32>
    %180 = arith.select %178, %20, %179 : vector<8x128xi1>, vector<8x128xf32>
    %181 = arith.addf %176, %180 : vector<8x128xf32>
    %c0_120 = arith.constant 0 : index
    %c13_121 = arith.constant 13 : index
    %c0_122 = arith.constant 0 : index
    %c0_123 = arith.constant 0 : index
    %182 = vector.load %arg4[%c0_120, %c13_121, %c0_122, %c0_123] : memref<1x15x8x128xf32, #tpu.memory_space<vmem>>, vector<1x1x8x128xf32>
    %183 = vector.shape_cast %182 : vector<1x1x8x128xf32> to vector<8x128xf32>
    %184 = vector.shape_cast %181 : vector<8x128xf32> to vector<1x1x8x128xf32>
    tpu.vector_store %arg4[%c0_120, %c13_121, %c0_122, %c0_123], %184 {strides = array<i32>} : memref<1x15x8x128xf32, #tpu.memory_space<vmem>>, vector<1x1x8x128xf32>,
    %c0_124 = arith.constant 0 : index
    %c14 = arith.constant 14 : index
    %c0_125 = arith.constant 0 : index
    %c0_126 = arith.constant 0 : index
    %185 = vector.load %arg4[%c0_124, %c14, %c0_125, %c0_126] : memref<1x15x8x128xf32, #tpu.memory_space<vmem>>, vector<1x1x8x128xf32>
    %186 = vector.shape_cast %185 : vector<1x1x8x128xf32> to vector<8x128xf32>
    %c14_i32_127 = arith.constant 14 : i32
    %187 = vector.broadcast %c14_i32_127 : i32 to vector<8x128xi32>
    %188 = arith.cmpi eq, %44, %187 : vector<8x128xi32>
    %cst_128 = arith.constant 0.000000e+00 : f32
    %189 = vector.broadcast %cst_128 : f32 to vector<8x128xf32>
    %190 = arith.select %188, %20, %189 : vector<8x128xi1>, vector<8x128xf32>
    %191 = arith.addf %186, %190 : vector<8x128xf32>
    %c0_129 = arith.constant 0 : index
    %c14_130 = arith.constant 14 : index
    %c0_131 = arith.constant 0 : index
    %c0_132 = arith.constant 0 : index
    %192 = vector.load %arg4[%c0_129, %c14_130, %c0_131, %c0_132] : memref<1x15x8x128xf32, #tpu.memory_space<vmem>>, vector<1x1x8x128xf32>
    %193 = vector.shape_cast %192 : vector<1x1x8x128xf32> to vector<8x128xf32>
    %194 = vector.shape_cast %191 : vector<8x128xf32> to vector<1x1x8x128xf32>
    tpu.vector_store %arg4[%c0_129, %c14_130, %c0_131, %c0_132], %194 {strides = array<i32>} : memref<1x15x8x128xf32, #tpu.memory_space<vmem>>, vector<1x1x8x128xf32>,
    return
  }
  func.func @transform_0(%arg0: i32, %arg1: i32) -> (i32, i32) {
    %c1_i32 = arith.constant 1 : i32
    %0 = arith.muli %arg0, %c1_i32 : i32
    %1 = arith.addi %0, %arg1 : i32
    %c0_i32 = arith.constant 0 : i32
    %c0_i32_0 = arith.constant 0 : i32
    return %c0_i32, %1 : i32, i32
  }
  func.func @transform_1(%arg0: i32, %arg1: i32) -> (i32, i32) {
    %c1_i32 = arith.constant 1 : i32
    %0 = arith.muli %arg0, %c1_i32 : i32
    %1 = arith.addi %0, %arg1 : i32
    %c0_i32 = arith.constant 0 : i32
    %c0_i32_0 = arith.constant 0 : i32
    return %c0_i32, %1 : i32, i32
  }
  func.func @transform_2(%arg0: i32, %arg1: i32) -> (i32, i32, i32, i32) {
    %c0_i32 = arith.constant 0 : i32
    %c0_i32_0 = arith.constant 0 : i32
    %c0_i32_1 = arith.constant 0 : i32
    %c0_i32_2 = arith.constant 0 : i32
    return %arg0, %c0_i32, %c0_i32_0, %c0_i32_1 : i32, i32, i32, i32
  }
}

</mosaic_0001>

<llo_original>
// kernel: tpu_custom_call.1
$region0: #{tpu_custom_call.1}
  #allocation0 [shape = 'u32[]', space=smem, size = 0x4, offset = 0x4, fixed_abs, tag = 'smem constant byte address 0x4 - core index']
  #allocation1 [shape = 'u32[72,128]{1,0:T(1,128)}', space=vmem, size = 0x9000, scoped, tag = 'internal scratch']
  %s0 = inlined_call_operand.hbm [shape: f32[8,128], index: 0, kind: input, shape index: {}]
  %s1 = inlined_call_operand.hbm [shape: s32[1,128], index: 1, kind: input, shape index: {}]
  %s2 = inlined_call_operand.hbm [shape: f32[1,15,8,128], index: 2, kind: output, shape index: {}]
  %s3 = sld [smem:[#allocation0]]
  $region30: #{tpu_custom_call.1} parent=0
    _
  %s5 = ssub.s32 1, %s3
  %s6 = scalar_select 0, %s5, %s3
  $region1: #{tpu_custom_call.1} parent=0
    #allocation2 [shape = 'u8[4096]{0}', space=vmem, size = 0x1000, scoped, tag = 'input window, operand 0, single buffered']
    #allocation3 [shape = 's32[1]{0}', space=sflag, size = 0x4, scoped, tag = 'scoped memory for tpu_custom_call.1']
    #allocation4 [shape = 's32[1]{0}', space=sflag, size = 0x4, scoped, tag = 'scoped memory for tpu_custom_call.1']
    #allocation5 [shape = 'u8[512]{0}', space=vmem, size = 0x400, scoped, tag = 'input window, operand 1, single buffered']
    #allocation6 [shape = 's32[1]{0}', space=sflag, size = 0x4, scoped, tag = 'scoped memory for tpu_custom_call.1']
    #allocation7 [shape = 'u8[61440]{0}', space=vmem, size = 0xf000, scoped, tag = 'output window, operand 0, single buffered']
    %7 = vsyncpa [#allocation3], 0
    %8 = vsyncpa [#allocation6], 0
    %9 = vsyncpa [#allocation4], 0
    // Predicated region
    $region2: #{tpu_custom_call.1} parent=1 // pred_check
      _
    $region3: #{tpu_custom_call.1} parent=1 // pred_check_branch
      %11 = sbr.rel (0) target = $region5
    $region4: #{tpu_custom_call.1} parent=1 // pred_region
      %s12 = sadd.s32 0, 0
      %14 = vsyncadd [#allocation3], 0
      %s15 = smul.addr %s12, 8
      %s16 = scalar_lea.hbm %s0, %s15
      %s18 = sshll.u32 %s16, 4
      %s19 = int_to_ptr.hbm [resolvable:$true] %s18
      %s20 = sshll.u32 [#allocation2], 4
      %s21 = int_to_ptr.vmem [resolvable:$true] %s20
      %23 = dma.hbm_to_vmem [thread:$0]  %s19, 128, %s21, [#allocation3]
    $region5: #{tpu_custom_call.1} parent=1 // pred_fallthru
      _
    // Predicated region
    $region6: #{tpu_custom_call.1} parent=1 // pred_check
      _
    $region7: #{tpu_custom_call.1} parent=1 // pred_check_branch
      %25 = sbr.rel (0) target = $region9
    $region8: #{tpu_custom_call.1} parent=1 // pred_region
      %s26 = sadd.s32 0, 0
      %28 = vsyncadd [#allocation6], 0
      %s29 = scalar_lea.hbm %s1, %s26
      %s31 = sshll.u32 %s29, 4
      %s32 = int_to_ptr.hbm [resolvable:$true] %s31
      %s33 = sshll.u32 [#allocation5], 4
      %s34 = int_to_ptr.vmem [resolvable:$true] %s33
      %36 = dma.hbm_to_vmem [thread:$0]  %s32, 16, %s34, [#allocation6]
    $region9: #{tpu_custom_call.1} parent=1 // pred_fallthru
      _
    // Predicated region
    $region10: #{tpu_custom_call.1} parent=1 // pred_check
      _
    $region11: #{tpu_custom_call.1} parent=1 // pred_check_branch
      %38 = sbr.rel (0) target = $region13
    $region12: #{tpu_custom_call.1} parent=1 // pred_region
      %40 = dma.done [#allocation3], 128
    $region13: #{tpu_custom_call.1} parent=1 // pred_fallthru
      _
    // Predicated region
    $region14: #{tpu_custom_call.1} parent=1 // pred_check
      _
    $region15: #{tpu_custom_call.1} parent=1 // pred_check_branch
      %42 = sbr.rel (0) target = $region17
    $region16: #{tpu_custom_call.1} parent=1 // pred_region
      %44 = dma.done [#allocation6], 16
    $region17: #{tpu_custom_call.1} parent=1 // pred_fallthru
      _
    %s45 = sadd.s32 0, 0
    %s46 = sadd.s32 0, 0
    %p47 = scmp.eq.s32.totalorder 0, 0
    // Predicated region
    $region18: #{tpu_custom_call.1} parent=1 // pred_check
      %p48 = pneg %p47
    $region19: #{tpu_custom_call.1} parent=1 // pred_check_branch
      %50 = sbr.rel (%p48) target = $region21
    $region20: #{tpu_custom_call.1} parent=1 // pred_region
      %51 = vst [vmem:[#allocation7] sm:$0xff] 0.0
      %52 = vst [vmem:[#allocation7 + $0x8] sm:$0xff] 0.0
      %53 = vst [vmem:[#allocation7 + $0x10] sm:$0xff] 0.0
      %54 = vst [vmem:[#allocation7 + $0x18] sm:$0xff] 0.0
      %55 = vst [vmem:[#allocation7 + $0x20] sm:$0xff] 0.0
      %56 = vst [vmem:[#allocation7 + $0x28] sm:$0xff] 0.0
      %57 = vst [vmem:[#allocation7 + $0x30] sm:$0xff] 0.0
      %58 = vst [vmem:[#allocation7 + $0x38] sm:$0xff] 0.0
      %59 = vst [vmem:[#allocation7 + $0x40] sm:$0xff] 0.0
      %60 = vst [vmem:[#allocation7 + $0x48] sm:$0xff] 0.0
      %61 = vst [vmem:[#allocation7 + $0x50] sm:$0xff] 0.0
      %62 = vst [vmem:[#allocation7 + $0x58] sm:$0xff] 0.0
      %63 = vst [vmem:[#allocation7 + $0x60] sm:$0xff] 0.0
      %64 = vst [vmem:[#allocation7 + $0x68] sm:$0xff] 0.0
      %65 = vst [vmem:[#allocation7 + $0x70] sm:$0xff] 0.0
    $region21: #{tpu_custom_call.1} parent=1 // pred_fallthru
      _
    %v66 = vld [vmem:[#allocation2] sm:$0xff]
    %v67 = vld [vmem:[#allocation5] sm:$0x1]
    %v68 = vrot.slane %v66, 4
    %v69 = vmax.f32 %v66, %v68
    %v70 = vrot.slane %v69, 2
    %v71 = vmax.f32 %v69, %v70
    %v72 = vrot.slane %v71, 1
    %v73 = vmax.f32 %v71, %v72
    %v74 = vsub.f32 %v66, %v73
    %v75 = vmul.f32 %v74, 1.442695
    %v76 = vpow.pop %v75
    %v77 = vrot.slane %v76, 4
    %v78 = vadd.f32 %v76, %v77
    %v79 = vrot.slane %v78, 2
    %v80 = vadd.f32 %v78, %v79
    %v81 = vrot.slane %v80, 1
    %v82 = vadd.f32 %v80, %v81
    %v83 = vrcp.pop %v82
    %v84 = vmul.f32 %v82, %v83
    %v85 = vsub.f32 1.0, %v84
    %v86 = vmul.f32 %v83, %v85
    %v87 = vadd.f32 %v83, %v86
    %vm88 = vweird.f32 %v82
    %vm89 = vweird.f32 %v83
    %vm90 = vmor %vm88, %vm89
    %v91 = vsel %vm90, %v83, %v87
    %v92 = vand.u32 2147483647, %v82
    %vm93 = vcmp.eq.f32.partialorder %v92, 8.507059e+37
    %v94 = vand.u32 %v82, 2147483648
    %v95 = vor.u32 1.1754944e-38, %v94
    %v96 = vsel %vm93, %v95, %v91
    %v97 = vmul.f32 %v76, %v96
    %v98 = vlaneseq
    %v99 = vshrl.u32 %v98, 7
    %v100 = vperm.slane %v67, 0
    %vm101 = vcmp.eq.s32.totalorder %v99, %v100
    %v102 = vsel %vm101, 1, 0
    %v103 = vcvt.s32.f32 %v102
    %v104 = vsub.f32 %v97, %v103
    %v105 = vlaneseq
    %v106 = vand.u32 %v105, 127
    %s107 = sadd.s32 0, 0
    %s108 = smul.u32 %s107, 128
    %v109 = vstv %s108
    %v110 = vadd.s32 %v106, %v109
    %vm111 = vcmp.lt.s32.totalorder %v110, 64
    %v112 = vmul.f32 %v97, 15.0
    %v113 = vceil.f32 %v112
    %v114 = vcvt.f32.s32.to.zero.pseudo %v113
    %v115 = vsub.s32 %v114, 1
    %vm116 = vcmp.gt.s32.totalorder %v115, 0
    %v117 = vsel %vm116, %v115, 0
    %vm118 = vcmp.lt.s32.totalorder %v117, 14
    %v119 = vsel %vm118, %v117, 14
    %vm120 = vcmp.gt.f32.partialorder %v97, 0.0
    %v121 = vsel %vm111, 1, 0
    %vm122 = vcmp.eq.s32.totalorder %v121, 1
    %vm123 = vmand %vm122, %vm120
    %v124 = vsel %vm123, %v119, 4294967295
    %v125 = vld [vmem:[#allocation7] sm:$0xff]
    %vm126 = vcmp.eq.s32.totalorder %v124, 0
    %v127 = vsel %vm126, %v104, 0.0
    %v128 = vadd.f32 %v125, %v127
    %129 = vst [vmem:[#allocation7] sm:$0xff] %v128
    %s130 = scalar_lea.vmem [#allocation7], 8
    %v131 = vld [vmem:[%s130] sm:$0xff]
    %vm132 = vcmp.eq.s32.totalorder %v124, 1
    %v133 = vsel %vm132, %v104, 0.0
    %v134 = vadd.f32 %v131, %v133
    %135 = vst [vmem:[%s130] sm:$0xff] %v134
    %s136 = scalar_lea.vmem [#allocation7], 16
    %v137 = vld [vmem:[%s136] sm:$0xff]
    %vm138 = vcmp.eq.s32.totalorder %v124, 2
    %v139 = vsel %vm138, %v104, 0.0
    %v140 = vadd.f32 %v137, %v139
    %141 = vst [vmem:[%s136] sm:$0xff] %v140
    %s142 = scalar_lea.vmem [#allocation7], 24
    %v143 = vld [vmem:[%s142] sm:$0xff]
    %vm144 = vcmp.eq.s32.totalorder %v124, 3
    %v145 = vsel %vm144, %v104, 0.0
    %v146 = vadd.f32 %v143, %v145
    %147 = vst [vmem:[%s142] sm:$0xff] %v146
    %s148 = scalar_lea.vmem [#allocation7], 32
    %v149 = vld [vmem:[%s148] sm:$0xff]
    %vm150 = vcmp.eq.s32.totalorder %v124, 4
    %v151 = vsel %vm150, %v104, 0.0
    %v152 = vadd.f32 %v149, %v151
    %153 = vst [vmem:[%s148] sm:$0xff] %v152
    %s154 = scalar_lea.vmem [#allocation7], 40
    %v155 = vld [vmem:[%s154] sm:$0xff]
    %vm156 = vcmp.eq.s32.totalorder %v124, 5
    %v157 = vsel %vm156, %v104, 0.0
    %v158 = vadd.f32 %v155, %v157
    %159 = vst [vmem:[%s154] sm:$0xff] %v158
    %s160 = scalar_lea.vmem [#allocation7], 48
    %v161 = vld [vmem:[%s160] sm:$0xff]
    %vm162 = vcmp.eq.s32.totalorder %v124, 6
    %v163 = vsel %vm162, %v104, 0.0
    %v164 = vadd.f32 %v161, %v163
    %165 = vst [vmem:[%s160] sm:$0xff] %v164
    %s166 = scalar_lea.vmem [#allocation7], 56
    %v167 = vld [vmem:[%s166] sm:$0xff]
    %vm168 = vcmp.eq.s32.totalorder %v124, 7
    %v169 = vsel %vm168, %v104, 0.0
    %v170 = vadd.f32 %v167, %v169
    %171 = vst [vmem:[%s166] sm:$0xff] %v170
    %s172 = scalar_lea.vmem [#allocation7], 64
    %v173 = vld [vmem:[%s172] sm:$0xff]
    %vm174 = vcmp.eq.s32.totalorder %v124, 8
    %v175 = vsel %vm174, %v104, 0.0
    %v176 = vadd.f32 %v173, %v175
    %177 = vst [vmem:[%s172] sm:$0xff] %v176
    %s178 = scalar_lea.vmem [#allocation7], 72
    %v179 = vld [vmem:[%s178] sm:$0xff]
    %vm180 = vcmp.eq.s32.totalorder %v124, 9
    %v181 = vsel %vm180, %v104, 0.0
    %v182 = vadd.f32 %v179, %v181
    %183 = vst [vmem:[%s178] sm:$0xff] %v182
    %s184 = scalar_lea.vmem [#allocation7], 80
    %v185 = vld [vmem:[%s184] sm:$0xff]
    %vm186 = vcmp.eq.s32.totalorder %v124, 10
    %v187 = vsel %vm186, %v104, 0.0
    %v188 = vadd.f32 %v185, %v187
    %189 = vst [vmem:[%s184] sm:$0xff] %v188
    %s190 = scalar_lea.vmem [#allocation7], 88
    %v191 = vld [vmem:[%s190] sm:$0xff]
    %vm192 = vcmp.eq.s32.totalorder %v124, 11
    %v193 = vsel %vm192, %v104, 0.0
    %v194 = vadd.f32 %v191, %v193
    %195 = vst [vmem:[%s190] sm:$0xff] %v194
    %s196 = scalar_lea.vmem [#allocation7], 96
    %v197 = vld [vmem:[%s196] sm:$0xff]
    %vm198 = vcmp.eq.s32.totalorder %v124, 12
    %v199 = vsel %vm198, %v104, 0.0
    %v200 = vadd.f32 %v197, %v199
    %201 = vst [vmem:[%s196] sm:$0xff] %v200
    %s202 = scalar_lea.vmem [#allocation7], 104
    %v203 = vld [vmem:[%s202] sm:$0xff]
    %vm204 = vcmp.eq.s32.totalorder %v124, 13
    %v205 = vsel %vm204, %v104, 0.0
    %v206 = vadd.f32 %v203, %v205
    %207 = vst [vmem:[%s202] sm:$0xff] %v206
    %s208 = scalar_lea.vmem [#allocation7], 112
    %v209 = vld [vmem:[%s208] sm:$0xff]
    %vm210 = vcmp.eq.s32.totalorder %v124, 14
    %v211 = vsel %vm210, %v104, 0.0
    %v212 = vadd.f32 %v209, %v211
    %213 = vst [vmem:[%s208] sm:$0xff] %v212
    // Predicated region
    $region22: #{tpu_custom_call.1} parent=1 // pred_check
      _
    $region23: #{tpu_custom_call.1} parent=1 // pred_check_branch
      %215 = sbr.rel (0) target = $region25
    $region24: #{tpu_custom_call.1} parent=1 // pred_region
      %217 = vsyncadd [#allocation4], 0
      %s218 = sshll.u32 [#allocation7], 4
      %s219 = int_to_ptr.vmem [resolvable:$true] %s218
      %s220 = sshll.u32 %s2, 4
      %s221 = int_to_ptr.hbm [resolvable:$true] %s220
      %226 = dma.vmem_to_hbm [thread:$0]  %s219, 1920, %s221, [#allocation4], 128, 128, 8
    $region25: #{tpu_custom_call.1} parent=1 // pred_fallthru
      _
    // Predicated region
    $region26: #{tpu_custom_call.1} parent=1 // pred_check
      _
    $region27: #{tpu_custom_call.1} parent=1 // pred_check_branch
      %228 = sbr.rel (0) target = $region29
    $region28: #{tpu_custom_call.1} parent=1 // pred_region
      %230 = dma.done [#allocation4], 1920
    $region29: #{tpu_custom_call.1} parent=1 // pred_fallthru
      _
    %231 = vsyncpa [#allocation3], 1
    %232 = vsyncpa [#allocation6], 1
    %233 = vsyncpa [#allocation4], 1

</llo_original>
